<compile_context>
chip_gen: v7x
topology: tpu7x:2x2x1
jax: 0.10.0
libtpu: 0.0.40
codegen_flags: <defaults>
</compile_context>

<pallas_src>
import jax
import jax.numpy as jnp
from jax.experimental import pallas as pl
from jax.experimental.pallas import tpu as pltpu

LANE = 128   # lane width (last dim)
SUB = 16     # bf16 sublane packing for the batch-tiled bf16 input


def _round_up(x, m):
    return ((x + m - 1) // m) * m


def chatbot_kernel(x_ref, w1_ref, b1_ref, w2_ref, b2_ref, o_ref):
    # fc1: [TB, In](bf16) @ [In, H_p](bf16) -> f32 accumulate, bias add in f32.
    h = jnp.dot(x_ref[...], w1_ref[...], preferred_element_type=jnp.float32) + b1_ref[...]
    # ReLU (f32, VPU). Padded hidden columns are exactly 0, so ReLU is a no-op there.
    h = jnp.maximum(h, 0.0)
    # Dropout(p=0.3): identity in eval mode.
    # TODO(synk): training-mode dropout would need pltpu.prng_seed + pltpu.prng_random_bits
    # masking plus 1/(1-p) scaling.
    # fc2: cast activations to bf16 for the MXU, accumulate in f32, bias add in f32.
    logits = (
        jnp.dot(h.astype(w2_ref.dtype), w2_ref[...], preferred_element_type=jnp.float32)
        + b2_ref[...]
    )
    # Softmax over the class axis (dim=1). Padded class columns carry a -1e30 bias, so
    # exp(logit - m) underflows to 0 there and they do not contribute to the denominator.
    m = jnp.max(logits, axis=1, keepdims=True)
    e = jnp.exp(logits - m)
    denom = jnp.sum(e, axis=1, keepdims=True)
    # Exact divide: denom is a [TB, 1] column, so this is essentially free next to the
    # [TB, Out_p] exp, and it keeps softmax rows summing to 1 at f32 precision.
    o_ref[...] = (e / denom).astype(o_ref.dtype)


def prepare_chatbot_params(w1, b1, w2, b2):
    """Pad + bf16-cast the parameters ONCE at model-load time (hoisted out of the per-call path).

    w1: [In, H]; b1: [1, H]; w2: [H, Out]; b2: [1, Out]
    """
    In, H = w1.shape
    Out = w2.shape[1]
    # NOTE: on v6e/v7x (2x256x256 MXU) rounding H_p/Out_p up to 256 when the true dims are
    # >=128 fills the full MXU; irrelevant at these demo sizes (kept at 128 for v5e too).
    H_p = _round_up(H, LANE)
    Out_p = _round_up(Out, LANE)

    f32, bf16 = jnp.float32, jnp.bfloat16
    w1p = jnp.zeros((In, H_p), bf16).at[:, :H].set(w1.astype(bf16))
    b1p = jnp.zeros((1, H_p), f32).at[:, :H].set(b1.reshape(1, H).astype(f32))
    w2p = jnp.zeros((H_p, Out_p), bf16).at[:H, :Out].set(w2.astype(bf16))
    # Padded output classes get a -1e30 bias so softmax excludes them (bias add stays in f32).
    b2p = jnp.full((1, Out_p), -1e30, f32).at[:, :Out].set(b2.reshape(1, Out).astype(f32))

    return dict(w1p=w1p, b1p=b1p, w2p=w2p, b2p=b2p,
                In=In, H=H, Out=Out, H_p=H_p, Out_p=Out_p)


def chatbot_forward(x, params, *, block_b=512):
    """x: [B, In]; params from prepare_chatbot_params -> [B, Out] (f32 softmax probs)."""
    B, In = x.shape
    assert In == params["In"], "input feature size mismatch"
    Out, Out_p, H_p = params["Out"], params["Out_p"], params["H_p"]
    w1p, b1p, w2p, b2p = params["w1p"], params["b1p"], params["w2p"], params["b2p"]

    # Batch tile: multiple of 16 (bf16 sublane packing), capped at block_b, and forced to
    # >=2 tiles once the batch is large enough so both v7x TensorCores get work.
    B16 = _round_up(B, SUB)
    TB = min(_round_up(block_b, SUB), B16)
    if B16 >= 2 * SUB:
        TB = min(TB, _round_up(pl.cdiv(B16, 2), SUB))
    B_p = _round_up(B, TB)
    grid = (B_p // TB,)

    # Per-call work on x only: bf16 cast + batch-row padding. The feature dim stays the true
    # In (full-array block dim) -> no padded-read inflation on the dominant input stream.
    xp = jnp.zeros((B_p, In), jnp.bfloat16).at[:B, :].set(x.astype(jnp.bfloat16))

    # VMEM budget: single-buffered weights + double-buffered x/out tiles + f32 intermediates,
    # with 2x headroom, clamped to [32 MiB, 64 MiB] (safe on v5e scope and v7x physical VMEM).
    bytes_w = 2 * (w1p.size + w2p.size) + 4 * (b1p.size + b2p.size)
    bytes_io = 2 * (TB * In * 2 + TB * Out_p * 4)
    bytes_tmp = (TB * H_p + 2 * TB * Out_p) * 4
    vmem_limit = int(min(64 * 1024 * 1024,
                         max(32 * 1024 * 1024,
                             2 * (bytes_w + bytes_io + bytes_tmp) + (4 << 20))))

    # Constant-index operands never change across grid steps -> single buffer (no waste).
    resident = dict(pipeline_mode=pl.Buffered(1))

    # TODO(synk): for vocab-scale In on v7x (64 MiB VMEM), add a trailing "arbitrary" K-tiling
    # grid axis over In with an f32 VMEM scratch accumulator instead of shrinking TB.
    out_padded = pl.pallas_call(
        chatbot_kernel,
        out_shape=jax.ShapeDtypeStruct((B_p, Out_p), jnp.float32),
        grid=grid,
        in_specs=[
            pl.BlockSpec((TB, In), lambda i: (i, 0)),                   # x: tiled over batch
            pl.BlockSpec((In, H_p), lambda i: (0, 0), **resident),      # w1: VMEM-resident
            pl.BlockSpec((1, H_p), lambda i: (0, 0), **resident),       # b1
            pl.BlockSpec((H_p, Out_p), lambda i: (0, 0), **resident),   # w2
            pl.BlockSpec((1, Out_p), lambda i: (0, 0), **resident),     # b2
        ],
        out_specs=pl.BlockSpec((TB, Out_p), lambda i: (i, 0)),
        compiler_params=pltpu.CompilerParams(
            dimension_semantics=("parallel",),   # shard batch tiles across TCs (v7x)
            vmem_limit_bytes=vmem_limit,
        ),
    )(xp, w1p, b1p, w2p, b2p)

    # Slice padded batch rows / padded class columns back off.
    return out_padded[:B, :Out]


def _reference(x, w1, b1, w2, b2):
    h = jnp.maximum(x @ w1 + b1, 0.0)
    logits = h @ w2 + b2
    return jax.nn.softmax(logits, axis=1)


if __name__ == "__main__":
    # Small shapes consistent with the module's forward: x is [batch, input_size].
    batch, input_size, hidden_size, output_size = 8, 32, 64, 16

    key = jax.random.PRNGKey(0)
    kx, kw1, kb1, kw2, kb2 = jax.random.split(key, 5)

    x = jax.random.normal(kx, (batch, input_size), dtype=jnp.float32)

    # Deterministic parameter init (uniform, PyTorch-Linear-like bounds).
    bound1 = 1.0 / (input_size ** 0.5)
    w1 = jax.random.uniform(kw1, (input_size, hidden_size), jnp.float32, -bound1, bound1)
    b1 = jax.random.uniform(kb1, (1, hidden_size), jnp.float32, -bound1, bound1)
    bound2 = 1.0 / (hidden_size ** 0.5)
    w2 = jax.random.uniform(kw2, (hidden_size, output_size), jnp.float32, -bound2, bound2)
    b2 = jax.random.uniform(kb2, (1, output_size), jnp.float32, -bound2, bound2)

    # One-time parameter prep (hoisted out of the per-call path).
    params = prepare_chatbot_params(w1, b1, w2, b2)

    out = chatbot_forward(x, params)
    out = jax.block_until_ready(out)

    ref = _reference(x, w1, b1, w2, b2)
    assert out.shape == (batch, output_size)
    # bf16 MXU inputs -> compare against the f32 reference at a tolerance comfortably above
    # bf16 rounding but tight for softmax probabilities.
    assert jnp.allclose(out, ref, atol=5e-3, rtol=5e-3), "mismatch vs reference"
    # Exact divide -> rows normalize to 1 at f32 precision.
    assert jnp.allclose(jnp.sum(out, axis=1), 1.0, atol=1e-3), "softmax rows not normalized"

    print("KERNEL_OK")
</pallas_src>

<mosaic_0001>
module attributes {stable_mosaic.version = 11 : i64} {
  func.func @chatbot_kernel(%arg0: i32, %arg1: memref<16x32xbf16, #tpu.memory_space<vmem>>, %arg2: memref<32x128xbf16, #tpu.memory_space<vmem>>, %arg3: memref<1x128xf32, #tpu.memory_space<vmem>>, %arg4: memref<128x128xbf16, #tpu.memory_space<vmem>>, %arg5: memref<1x128xf32, #tpu.memory_space<vmem>>, %arg6: memref<16x128xf32, #tpu.memory_space<vmem>>) attributes {dimension_semantics = [#tpu.dimension_semantics<parallel>], iteration_bounds = array<i64: 1>, scalar_prefetch = 0 : i64, scratch_operands = 0 : i64, tpu.core_type = #tpu.core_type<tc>, window_params = [{transform_indices = @transform_0, window_bounds = array<i64: 16, 32>}, {pipeline_mode = #tpu.pipeline_mode<synchronous>, transform_indices = @transform_1, window_bounds = array<i64: 32, 128>}, {pipeline_mode = #tpu.pipeline_mode<synchronous>, transform_indices = @transform_2, window_bounds = array<i64: 1, 128>}, {pipeline_mode = #tpu.pipeline_mode<synchronous>, transform_indices = @transform_3, window_bounds = array<i64: 128, 128>}, {pipeline_mode = #tpu.pipeline_mode<synchronous>, transform_indices = @transform_4, window_bounds = array<i64: 1, 128>}, {transform_indices = @transform_5, window_bounds = array<i64: 16, 128>}]} {
    %c0 = arith.constant 0 : index
    %c0_0 = arith.constant 0 : index
    %0 = vector.load %arg1[%c0, %c0_0] : memref<16x32xbf16, #tpu.memory_space<vmem>>, vector<16x32xbf16>
    %c0_1 = arith.constant 0 : index
    %c0_2 = arith.constant 0 : index
    %1 = vector.load %arg2[%c0_1, %c0_2] : memref<32x128xbf16, #tpu.memory_space<vmem>>, vector<32x128xbf16>
    %cst = arith.constant dense<0.000000e+00> : vector<16x128xf32>
    %2 = tpu.matmul %0, %1, %cst {dimension_numbers = #tpu.dot_dimension_numbers<[1], [0], [0], [1], [0, 0, 1, 1], [], []>} : vector<16x32xbf16>, vector<32x128xbf16>, vector<16x128xf32> -> vector<16x128xf32>
    %c0_3 = arith.constant 0 : index
    %c0_4 = arith.constant 0 : index
    %3 = vector.load %arg3[%c0_3, %c0_4] : memref<1x128xf32, #tpu.memory_space<vmem>>, vector<1x128xf32>
    %4 = vector.broadcast %3 : vector<1x128xf32> to vector<16x128xf32>
    %5 = arith.addf %2, %4 : vector<16x128xf32>
    %cst_5 = arith.constant 0.000000e+00 : f32
    %6 = vector.broadcast %cst_5 : f32 to vector<16x128xf32>
    %7 = arith.maximumf %5, %6 : vector<16x128xf32>
    %8 = arith.truncf %7 : vector<16x128xf32> to vector<16x128xbf16>
    %c0_6 = arith.constant 0 : index
    %c0_7 = arith.constant 0 : index
    %9 = vector.load %arg4[%c0_6, %c0_7] : memref<128x128xbf16, #tpu.memory_space<vmem>>, vector<128x128xbf16>
    %cst_8 = arith.constant dense<0.000000e+00> : vector<16x128xf32>
    %10 = tpu.matmul %8, %9, %cst_8 {dimension_numbers = #tpu.dot_dimension_numbers<[1], [0], [0], [1], [0, 0, 1, 1], [], []>} : vector<16x128xbf16>, vector<128x128xbf16>, vector<16x128xf32> -> vector<16x128xf32>
    %c0_9 = arith.constant 0 : index
    %c0_10 = arith.constant 0 : index
    %11 = vector.load %arg5[%c0_9, %c0_10] : memref<1x128xf32, #tpu.memory_space<vmem>>, vector<1x128xf32>
    %12 = vector.broadcast %11 : vector<1x128xf32> to vector<16x128xf32>
    %13 = arith.addf %10, %12 : vector<16x128xf32>
    %cst_11 = arith.constant dense<0xFF800000> : vector<16xf32>
    %14 = vector.multi_reduction <maximumf>, %13, %cst_11 [1] : vector<16x128xf32> to vector<16xf32>
    %15 = vector.shape_cast %14 : vector<16xf32> to vector<16x1xf32>
    %16 = vector.broadcast %15 : vector<16x1xf32> to vector<16x128xf32>
    %17 = arith.subf %13, %16 : vector<16x128xf32>
    %18 = math.exp %17 : vector<16x128xf32>
    %cst_12 = arith.constant dense<0.000000e+00> : vector<16xf32>
    %19 = vector.multi_reduction <add>, %18, %cst_12 [1] : vector<16x128xf32> to vector<16xf32>
    %20 = vector.shape_cast %19 : vector<16xf32> to vector<16x1xf32>
    %21 = vector.broadcast %20 : vector<16x1xf32> to vector<16x128xf32>
    %22 = arith.divf %18, %21 : vector<16x128xf32>
    %c0_13 = arith.constant 0 : index
    %c0_14 = arith.constant 0 : index
    %23 = vector.load %arg6[%c0_13, %c0_14] : memref<16x128xf32, #tpu.memory_space<vmem>>, vector<16x128xf32>
    tpu.vector_store %arg6[%c0_13, %c0_14], %22 {strides = array<i32>} : memref<16x128xf32, #tpu.memory_space<vmem>>, vector<16x128xf32>,
    return
  }
  func.func @transform_0(%arg0: i32) -> (i32, i32) {
    %c0_i32 = arith.constant 0 : i32
    %c0_i32_0 = arith.constant 0 : i32
    return %arg0, %c0_i32 : i32, i32
  }
  func.func @transform_1(%arg0: i32) -> (i32, i32) {
    %c0_i32 = arith.constant 0 : i32
    %c0_i32_0 = arith.constant 0 : i32
    %c0_i32_1 = arith.constant 0 : i32
    return %c0_i32, %c0_i32_0 : i32, i32
  }
  func.func @transform_2(%arg0: i32) -> (i32, i32) {
    %c0_i32 = arith.constant 0 : i32
    %c0_i32_0 = arith.constant 0 : i32
    %c0_i32_1 = arith.constant 0 : i32
    return %c0_i32, %c0_i32_0 : i32, i32
  }
  func.func @transform_3(%arg0: i32) -> (i32, i32) {
    %c0_i32 = arith.constant 0 : i32
    %c0_i32_0 = arith.constant 0 : i32
    %c0_i32_1 = arith.constant 0 : i32
    return %c0_i32, %c0_i32_0 : i32, i32
  }
  func.func @transform_4(%arg0: i32) -> (i32, i32) {
    %c0_i32 = arith.constant 0 : i32
    %c0_i32_0 = arith.constant 0 : i32
    %c0_i32_1 = arith.constant 0 : i32
    return %c0_i32, %c0_i32_0 : i32, i32
  }
  func.func @transform_5(%arg0: i32) -> (i32, i32) {
    %c0_i32 = arith.constant 0 : i32
    %c0_i32_0 = arith.constant 0 : i32
    return %arg0, %c0_i32 : i32, i32
  }
}

</mosaic_0001>

<llo_original>
// kernel: tpu_custom_call.1
$region0: #{tpu_custom_call.1}
  #allocation0 [shape = 'u32[]', space=smem, size = 0x4, offset = 0x4, fixed_abs, tag = 'smem constant byte address 0x4 - core index']
  #allocation1 [shape = 'u32[144,128]{1,0:T(1,128)}', space=vmem, size = 0x12000, scoped, tag = 'internal scratch']
  %s0 = inlined_call_operand.hbm [shape: bf16[16,32], index: 0, kind: input, shape index: {}]
  %s1 = inlined_call_operand.hbm [shape: bf16[32,128], index: 1, kind: input, shape index: {}]
  %s2 = inlined_call_operand.vmem [shape: f32[1,128], index: 2, kind: input, shape index: {}]
  %s3 = inlined_call_operand.hbm [shape: bf16[128,128], index: 3, kind: input, shape index: {}]
  %s4 = inlined_call_operand.vmem [shape: f32[1,128], index: 4, kind: input, shape index: {}]
  %s5 = inlined_call_operand.hbm [shape: f32[16,128], index: 5, kind: output, shape index: {}]
  %s6 = sld [smem:[#allocation0]]
  $region42: #{tpu_custom_call.1} parent=0
    _
  %s8 = ssub.s32 1, %s6
  %s9 = scalar_select 0, %s8, %s6
  $region1: #{tpu_custom_call.1} parent=0
    #allocation2 [shape = 'u8[4096]{0}', space=vmem, size = 0x1000, scoped, tag = 'input window, operand 0, single buffered']
    #allocation3 [shape = 's32[1]{0}', space=sflag, size = 0x4, scoped, tag = 'scoped memory for tpu_custom_call.1']
    #allocation4 [shape = 's32[1]{0}', space=sflag, size = 0x4, scoped, tag = 'scoped memory for tpu_custom_call.1']
    #allocation5 [shape = 'u8[8192]{0}', space=vmem, size = 0x2000, scoped, tag = 'input window, operand 1, single buffered']
    #allocation6 [shape = 's32[1]{0}', space=sflag, size = 0x4, scoped, tag = 'scoped memory for tpu_custom_call.1']
    #allocation7 [shape = 'u8[32768]{0}', space=vmem, size = 0x8000, scoped, tag = 'input window, operand 3, single buffered']
    #allocation8 [shape = 'u8[8192]{0}', space=vmem, size = 0x2000, scoped, tag = 'output window, operand 0, single buffered']
    %10 = vsyncpa [#allocation3], 0
    %11 = vsyncpa [#allocation6], 0
    %12 = vsyncpa [#allocation4], 0
    // Predicated region
    $region2: #{tpu_custom_call.1} parent=1 // pred_check
      _
    $region3: #{tpu_custom_call.1} parent=1 // pred_check_branch
      %14 = sbr.rel (0) target = $region5
    $region4: #{tpu_custom_call.1} parent=1 // pred_region
      %s16 = ssub.s32 128, 128
      %17 = vsyncadd [#allocation3], %s16
      %s18 = sshll.u32 [#allocation2], 4
      %s19 = int_to_ptr.vmem [resolvable:$true] %s18
      %24 = dma.hbm_to_vmem [thread:$0]  %s0, 128, %s19, [#allocation3], 64, 64, 4
    $region5: #{tpu_custom_call.1} parent=1 // pred_fallthru
      _
    // Predicated region
    $region6: #{tpu_custom_call.1} parent=1 // pred_check
      _
    $region7: #{tpu_custom_call.1} parent=1 // pred_check_branch
      %26 = sbr.rel (0) target = $region9
    $region8: #{tpu_custom_call.1} parent=1 // pred_region
      %s28 = ssub.s32 256, 256
      %29 = vsyncadd [#allocation6], %s28
      %s30 = sshll.u32 [#allocation5], 4
      %s31 = int_to_ptr.vmem [resolvable:$true] %s30
      %36 = dma.hbm_to_vmem [thread:$0]  %s1, 256, %s31, [#allocation6], 64, 64, 4
    $region9: #{tpu_custom_call.1} parent=1 // pred_fallthru
      _
    // Predicated region
    $region10: #{tpu_custom_call.1} parent=1 // pred_check
      _
    $region11: #{tpu_custom_call.1} parent=1 // pred_check_branch
      %38 = sbr.rel (0) target = $region13
    $region12: #{tpu_custom_call.1} parent=1 // pred_region
      _
    $region13: #{tpu_custom_call.1} parent=1 // pred_fallthru
      _
    // Predicated region
    $region14: #{tpu_custom_call.1} parent=1 // pred_check
      _
    $region15: #{tpu_custom_call.1} parent=1 // pred_check_branch
      %40 = sbr.rel (0) target = $region17
    $region16: #{tpu_custom_call.1} parent=1 // pred_region
      %s42 = ssub.s32 1024, 1024
      %43 = vsyncadd [#allocation6], %s42
      %s44 = sshll.u32 [#allocation7], 4
      %s45 = int_to_ptr.vmem [resolvable:$true] %s44
      %50 = dma.hbm_to_vmem [thread:$0]  %s3, 1024, %s45, [#allocation6], 64, 64, 4
    $region17: #{tpu_custom_call.1} parent=1 // pred_fallthru
      _
    // Predicated region
    $region18: #{tpu_custom_call.1} parent=1 // pred_check
      _
    $region19: #{tpu_custom_call.1} parent=1 // pred_check_branch
      %52 = sbr.rel (0) target = $region21
    $region20: #{tpu_custom_call.1} parent=1 // pred_region
      _
    $region21: #{tpu_custom_call.1} parent=1 // pred_fallthru
      _
    // Predicated region
    $region22: #{tpu_custom_call.1} parent=1 // pred_check
      _
    $region23: #{tpu_custom_call.1} parent=1 // pred_check_branch
      %54 = sbr.rel (0) target = $region25
    $region24: #{tpu_custom_call.1} parent=1 // pred_region
      %55 = dma.done [#allocation3], 128
    $region25: #{tpu_custom_call.1} parent=1 // pred_fallthru
      _
    // Predicated region
    $region26: #{tpu_custom_call.1} parent=1 // pred_check
      _
    $region27: #{tpu_custom_call.1} parent=1 // pred_check_branch
      %57 = sbr.rel (0) target = $region29
    $region28: #{tpu_custom_call.1} parent=1 // pred_region
      %58 = dma.done [#allocation6], 256
    $region29: #{tpu_custom_call.1} parent=1 // pred_fallthru
      _
    // Predicated region
    $region30: #{tpu_custom_call.1} parent=1 // pred_check
      _
    $region31: #{tpu_custom_call.1} parent=1 // pred_check_branch
      %60 = sbr.rel (0) target = $region33
    $region32: #{tpu_custom_call.1} parent=1 // pred_region
      %61 = dma.done [#allocation6], 1024
    $region33: #{tpu_custom_call.1} parent=1 // pred_fallthru
      _
    %v63 = vld [vmem:[#allocation2] sm:$0xf]
    %v64 = vld [vmem:[#allocation2 + $0x4] sm:$0xf]
    %v65 = vld [vmem:[#allocation5] sm:$0xf]
    %v66 = vld [vmem:[#allocation5 + $0x4] sm:$0xf]
    %v67 = vld [vmem:[#allocation5 + $0x8] sm:$0xf]
    %v68 = vld [vmem:[#allocation5 + $0xc] sm:$0xf]
    %v69 = vld [vmem:[%s2] sm:$0x1]
    %v71 = vlaneseq
    %v72 = vshrl.u32 %v71, 7
    %v73 = vsub.s32 0, %v72
    %v74 = vrot.slane %v69, %v73
    %v78 = vunpack.c.l.b16 %v63
    %v79 = vunpack.c.l.b16 %v64
    %v80 = vpack.c.b16 %v79, %v78
    %v85 = vunpack.c.l.b16 %v65
    %v86 = vunpack.c.l.b16 %v66
    %v87 = vunpack.c.l.b16 %v67
    %v88 = vunpack.c.l.b16 %v68
    %v89 = vpack.c.b16 %v86, %v85
    %v90 = vpack.c.b16 %v88, %v87
    %vm93 = vcmask 261120
    %v95 = vsel %vm93, %v80, 0
    %97 = vmatprep.subr.bf16.mxu0 0
    %98 = vmatpush1.bf16.msra.mxu0 %v89
    %99 = vmatprep.subr.bf16.mxu0 0
    %100 = vmatpush1.bf16.msra.mxu0 %v90
    %101 = vmatprep.subr.bf16.mxu0 0
    %102 = vmatpush1.bf16.msra.mxu0 0
    %103 = vmatprep.subr.bf16.mxu0 0
    %104 = vmatpush1.bf16.msra.mxu0 0
    %105 = vmatprep.subr.bf16.mxu0 0
    %106 = vmatpush1.bf16.msra.mxu0 0
    %107 = vmatprep.subr.bf16.mxu0 0
    %108 = vmatpush1.bf16.msra.mxu0 0
    %109 = vmatprep.subr.bf16.mxu0 0
    %110 = vmatpush1.bf16.msra.mxu0 0
    %111 = vmatprep.subr.bf16.mxu0 0
    %112 = vmatpush1.bf16.msra.mxu0 0
    %113 = vmatprep.subr.bf16.mxu0 0
    %114 = vmatpush1.bf16.msra.mxu0 0
    %115 = vmatprep.subr.bf16.mxu0 0
    %116 = vmatpush1.bf16.msra.mxu0 0
    %117 = vmatprep.subr.bf16.mxu0 0
    %118 = vmatpush1.bf16.msra.mxu0 0
    %119 = vmatprep.subr.bf16.mxu0 0
    %120 = vmatpush1.bf16.msra.mxu0 0
    %121 = vmatprep.subr.bf16.mxu0 0
    %122 = vmatpush1.bf16.msra.mxu0 0
    %123 = vmatprep.subr.bf16.mxu0 0
    %124 = vmatpush1.bf16.msra.mxu0 0
    %125 = vmatprep.subr.bf16.mxu0 0
    %126 = vmatpush1.bf16.msra.mxu0 0
    %127 = vmatprep.subr.bf16.mxu0 0
    %128 = vmatpush1.bf16.msra.mxu0 0
    %129 = vmatprep.mubr.bf16.mxu0 0
    %130 = vmatmul.mubr.bf16.gmra.mrb[0].mxu0 %v95
    %v131 = vpop.f32.mrb[0].mxu0
    %v132 = vadd.f32 %v74, %v131
    %v133 = vpop.f32.mrb[0].mxu0
    %v134 = vpop.f32.mrb[0].mxu0
    %v135 = vadd.f32 %v74, %v134
    %v136 = vpop.f32.mrb[0].mxu0
    %137 = vdwg.mxu0
    %v138 = vmax.f32 %v132, 0.0
    %v139 = vmax.f32 %v135, 0.0
    %v140 = vpack.c.bf16 %v139, %v138
    %v141 = vld [vmem:[#allocation7] sm:$0xf]
    %v142 = vld [vmem:[#allocation7 + $0x4] sm:$0xf]
    %v143 = vld [vmem:[#allocation7 + $0x8] sm:$0xf]
    %v144 = vld [vmem:[#allocation7 + $0xc] sm:$0xf]
    %v145 = vld [vmem:[#allocation7 + $0x10] sm:$0xf]
    %v146 = vld [vmem:[#allocation7 + $0x14] sm:$0xf]
    %v147 = vld [vmem:[#allocation7 + $0x18] sm:$0xf]
    %v148 = vld [vmem:[#allocation7 + $0x1c] sm:$0xf]
    %v149 = vld [vmem:[#allocation7 + $0x20] sm:$0xf]
    %v150 = vld [vmem:[#allocation7 + $0x24] sm:$0xf]
    %v151 = vld [vmem:[#allocation7 + $0x28] sm:$0xf]
    %v152 = vld [vmem:[#allocation7 + $0x2c] sm:$0xf]
    %v153 = vld [vmem:[#allocation7 + $0x30] sm:$0xf]
    %v154 = vld [vmem:[#allocation7 + $0x34] sm:$0xf]
    %v155 = vld [vmem:[#allocation7 + $0x38] sm:$0xf]
    %v156 = vld [vmem:[#allocation7 + $0x3c] sm:$0xf]
    %v157 = vld [vmem:[%s4] sm:$0x1]
    %v159 = vlaneseq
    %v160 = vshrl.u32 %v159, 7
    %v161 = vsub.s32 0, %v160
    %v162 = vrot.slane %v157, %v161
    %v180 = vunpack.c.l.b16 %v141
    %v181 = vunpack.c.l.b16 %v142
    %v182 = vunpack.c.l.b16 %v143
    %v183 = vunpack.c.l.b16 %v144
    %v184 = vunpack.c.l.b16 %v145
    %v185 = vunpack.c.l.b16 %v146
    %v186 = vunpack.c.l.b16 %v147
    %v187 = vunpack.c.l.b16 %v148
    %v188 = vunpack.c.l.b16 %v149
    %v189 = vunpack.c.l.b16 %v150
    %v190 = vunpack.c.l.b16 %v151
    %v191 = vunpack.c.l.b16 %v152
    %v192 = vunpack.c.l.b16 %v153
    %v193 = vunpack.c.l.b16 %v154
    %v194 = vunpack.c.l.b16 %v155
    %v195 = vunpack.c.l.b16 %v156
    %v196 = vpack.c.b16 %v181, %v180
    %v197 = vpack.c.b16 %v183, %v182
    %v198 = vpack.c.b16 %v185, %v184
    %v199 = vpack.c.b16 %v187, %v186
    %v200 = vpack.c.b16 %v189, %v188
    %v201 = vpack.c.b16 %v191, %v190
    %v202 = vpack.c.b16 %v193, %v192
    %v203 = vpack.c.b16 %v195, %v194
    %212 = vmatprep.subr.bf16.mxu0 0
    %213 = vmatpush1.bf16.msra.mxu0 %v196
    %214 = vmatprep.subr.bf16.mxu0 0
    %215 = vmatpush1.bf16.msra.mxu0 %v197
    %216 = vmatprep.subr.bf16.mxu0 0
    %217 = vmatpush1.bf16.msra.mxu0 %v198
    %218 = vmatprep.subr.bf16.mxu0 0
    %219 = vmatpush1.bf16.msra.mxu0 %v199
    %220 = vmatprep.subr.bf16.mxu0 0
    %221 = vmatpush1.bf16.msra.mxu0 %v200
    %222 = vmatprep.subr.bf16.mxu0 0
    %223 = vmatpush1.bf16.msra.mxu0 %v201
    %224 = vmatprep.subr.bf16.mxu0 0
    %225 = vmatpush1.bf16.msra.mxu0 %v202
    %226 = vmatprep.subr.bf16.mxu0 0
    %227 = vmatpush1.bf16.msra.mxu0 %v203
    %228 = vmatprep.subr.bf16.mxu0 0
    %229 = vmatpush1.bf16.msra.mxu0 0
    %230 = vmatprep.subr.bf16.mxu0 0
    %231 = vmatpush1.bf16.msra.mxu0 0
    %232 = vmatprep.subr.bf16.mxu0 0
    %233 = vmatpush1.bf16.msra.mxu0 0
    %234 = vmatprep.subr.bf16.mxu0 0
    %235 = vmatpush1.bf16.msra.mxu0 0
    %236 = vmatprep.subr.bf16.mxu0 0
    %237 = vmatpush1.bf16.msra.mxu0 0
    %238 = vmatprep.subr.bf16.mxu0 0
    %239 = vmatpush1.bf16.msra.mxu0 0
    %240 = vmatprep.subr.bf16.mxu0 0
    %241 = vmatpush1.bf16.msra.mxu0 0
    %242 = vmatprep.subr.bf16.mxu0 0
    %243 = vmatpush1.bf16.msra.mxu0 0
    %244 = vmatprep.mubr.bf16.mxu0 0
    %245 = vmatmul.mubr.bf16.gmra.mrb[0].mxu0 %v140
    %v246 = vpop.f32.mrb[0].mxu0
    %v247 = vadd.f32 %v162, %v246
    %v248 = vpop.f32.mrb[0].mxu0
    %v249 = vpop.f32.mrb[0].mxu0
    %v250 = vadd.f32 %v162, %v249
    %v251 = vpop.f32.mrb[0].mxu0
    %252 = vdwg.mxu0
    %253 = vmax.xlane.f32.xlu0 %v247
    %v254 = vpop.xlane.xlu0 %253
    %255 = vmax.xlane.f32.xlu0 %v250
    %v256 = vpop.xlane.xlu0 %255
    %v257 = vsub.f32 %v247, %v254
    %v258 = vsub.f32 %v250, %v256
    %v259 = vmul.f32 %v257, 1.442695
    %v260 = vpow.pop %v259
    %v261 = vmul.f32 %v258, 1.442695
    %v262 = vpow.pop %v261
    %263 = vadd.xlane.f32.xlu0 %v260
    %v264 = vpop.xlane.xlu0 %263
    %265 = vadd.xlane.f32.xlu0 %v262
    %v266 = vpop.xlane.xlu0 %265
    %v267 = vrcp.pop %v264
    %v268 = vmul.f32 %v260, %v267
    %v269 = vrcp.pop %v266
    %v270 = vmul.f32 %v262, %v269
    %271 = vst [vmem:[#allocation8] sm:$0xff] %v268
    %272 = vst [vmem:[#allocation8 + $0x8] sm:$0xff] %v270
    // Predicated region
    $region34: #{tpu_custom_call.1} parent=1 // pred_check
      _
    $region35: #{tpu_custom_call.1} parent=1 // pred_check_branch
      %274 = sbr.rel (0) target = $region37
    $region36: #{tpu_custom_call.1} parent=1 // pred_region
      %s276 = ssub.s32 256, 256
      %277 = vsyncadd [#allocation4], %s276
      %s278 = sshll.u32 [#allocation8], 4
      %s279 = int_to_ptr.vmem [resolvable:$true] %s278
      %284 = dma.vmem_to_hbm [thread:$0]  %s279, 256, %s5, [#allocation4], 128, 128, 8
    $region37: #{tpu_custom_call.1} parent=1 // pred_fallthru
      _
    // Predicated region
    $region38: #{tpu_custom_call.1} parent=1 // pred_check
      _
    $region39: #{tpu_custom_call.1} parent=1 // pred_check_branch
      %286 = sbr.rel (0) target = $region41
    $region40: #{tpu_custom_call.1} parent=1 // pred_region
      %287 = dma.done [#allocation4], 256
    $region41: #{tpu_custom_call.1} parent=1 // pred_fallthru
      _
    %288 = vsyncpa [#allocation3], 1
    %289 = vsyncpa [#allocation6], 1
    %290 = vsyncpa [#allocation4], 1

</llo_original>
